<compile_context>
chip_gen: v7x
topology: tpu7x:2x2x1
jax: 0.10.0
libtpu: 0.0.40
codegen_flags: <defaults>
</compile_context>

<pallas_src>
import jax
import jax.numpy as jnp
from jax.experimental import pallas as pl
from jax.experimental.pallas import tpu as pltpu

LANE = 128


def _round_up(n, m):
    return ((n + m - 1) // m) * m


def _cdiv(a, b):
    return -(-a // b)


def _pick_batch_tiling(B, block_batch):
    """Pick (TB, n_steps) for the batch grid axis.

    - tiles <= block_batch rows,
    - >= 2 balanced steps when B >= 512 (dual-TC sharding on v7x; harmless on
      v5e/v6e),
    - TB a multiple of 256 for large batches (dense MXU cadence + bf16 sublane
      packing); tiny batches use an exact-fit multiple of 16/8 instead of a
      mostly-empty 256-row tile,
    - padding waste capped below one tile (TB derived from B, not the other way
      around).
    """
    n_steps = max(1, _cdiv(B, block_batch))
    if n_steps == 1 and B >= 512:
        n_steps = 2
    per_step = _cdiv(B, n_steps)
    if per_step >= 256:
        TB = _round_up(per_step, 256)
    elif per_step >= 16:
        TB = _round_up(per_step, 16)
    else:
        TB = _round_up(per_step, 8)
    n_steps = _cdiv(B, TB)  # re-derive so the last tile always overlaps B
    return TB, n_steps


def mlp_kernel(x_ref, w1_ref, b1_ref, w2_ref, b2_ref, w3_ref, b3_ref, o_ref):
    """Fused 3-layer MLP on one batch tile.

    x_ref: [TB, F] f32 (cast to bf16 here -- free VPU filler), weights bf16,
    biases f32 [1, out]. Matmuls run on the MXU with f32 accumulation; bias add
    and ReLU stay in f32 on the VPU. Output is stored bf16.
    """
    x = x_ref[...].astype(jnp.bfloat16)

    h1 = jnp.dot(x, w1_ref[...], preferred_element_type=jnp.float32)
    h1 = jnp.maximum(h1 + b1_ref[...], 0.0)

    h2 = jnp.dot(h1.astype(jnp.bfloat16), w2_ref[...],
                 preferred_element_type=jnp.float32)
    h2 = jnp.maximum(h2 + b2_ref[...], 0.0)

    out = jnp.dot(h2.astype(jnp.bfloat16), w3_ref[...],
                  preferred_element_type=jnp.float32)
    o_ref[...] = (out + b3_ref[...]).astype(o_ref.dtype)


def cnn_q_network_forward(x, params, *, block_batch=4096, min_pallas_batch=256):
    """x: [B, input_shape] f32 -> [B, num_actions] f32.

    block_batch: max rows per grid step (multiple of 256 recommended; 4096
    amortizes the ~0.35 us fixed per-grid-step cost while using only ~10 MiB
    of VMEM). min_pallas_batch: below this, use plain XLA (launch overhead
    dominates the kernel for tiny batches).
    """
    w1, b1, w2, b2, w3, b3 = params
    B, F = x.shape
    H1 = w1.shape[1]          # 128
    H2 = w2.shape[1]          # 256
    A = w3.shape[1]           # num_actions

    if B < min_pallas_batch:
        # Tiny-batch fallback: XLA's fused f32 MLP matches/beats the kernel and
        # avoids all padding/slicing passes.
        h1 = jnp.maximum(x @ w1 + b1, 0.0)
        h2 = jnp.maximum(h1 @ w2 + b2, 0.0)
        return h2 @ w3 + b3

    # Lane-pad only the (tiny) last-layer weights/bias so the output stays
    # lane-dense; x is NOT padded or pre-cast (it streams straight from HBM).
    Ap = _round_up(max(A, LANE), LANE)

    TB, n_steps = _pick_batch_tiling(B, block_batch)

    # One-time weight casts / pads in the wrapper (weights only, ~100 KiB).
    w1b = w1.astype(jnp.bfloat16)
    w2b = w2.astype(jnp.bfloat16)
    w3b = jnp.pad(w3.astype(jnp.bfloat16), ((0, 0), (0, Ap - A)))   # zero cols
    b1f = b1.astype(jnp.float32)
    b2f = b2.astype(jnp.float32)
    b3f = jnp.pad(b3.astype(jnp.float32), ((0, 0), (0, Ap - A)))    # zero cols

    flops = 2 * B * (F * H1 + H1 * H2 + H2 * Ap)
    bytes_accessed = (
        x.size * 4                                # f32 x streamed in (unpadded)
        + (w1b.size + w2b.size + w3b.size) * 2    # bf16 weights (VMEM-resident)
        + (b1f.size + b2f.size + b3f.size) * 4    # f32 biases
        + B * Ap * 2                              # bf16 output streamed out
    )

    out_padded = pl.pallas_call(
        mlp_kernel,
        out_shape=jax.ShapeDtypeStruct((B, Ap), jnp.bfloat16),
        grid=(n_steps,),
        in_specs=[
            pl.BlockSpec((TB, F), lambda i: (i, 0)),    # x tile: streamed
            pl.BlockSpec((F, H1), lambda i: (0, 0)),    # W1: resident
            pl.BlockSpec((1, H1), lambda i: (0, 0)),    # b1: resident
            pl.BlockSpec((H1, H2), lambda i: (0, 0)),   # W2: resident
            pl.BlockSpec((1, H2), lambda i: (0, 0)),    # b2: resident
            pl.BlockSpec((H2, Ap), lambda i: (0, 0)),   # W3: resident
            pl.BlockSpec((1, Ap), lambda i: (0, 0)),    # b3: resident
        ],
        out_specs=pl.BlockSpec((TB, Ap), lambda i: (i, 0)),
        compiler_params=pltpu.CompilerParams(
            dimension_semantics=("parallel",),
        ),
        cost_estimate=pl.CostEstimate(
            flops=flops, transcendentals=0, bytes_accessed=bytes_accessed),
    )(x, w1b, b1f, w2b, b2f, w3b, b3f)

    return out_padded[:, :A].astype(jnp.float32)


def init_params(key, input_shape, num_actions):
    """Deterministic PyTorch-nn.Linear-style init: U(-1/sqrt(fan_in), 1/sqrt(fan_in))."""
    dims = [(input_shape, 128), (128, 256), (256, num_actions)]
    params = []
    for (fan_in, fan_out) in dims:
        key, kw, kb = jax.random.split(key, 3)
        bound = 1.0 / jnp.sqrt(jnp.float32(fan_in))
        w = jax.random.uniform(kw, (fan_in, fan_out), jnp.float32, -bound, bound)
        b = jax.random.uniform(kb, (1, fan_out), jnp.float32, -bound, bound)
        params.extend([w, b])
    return tuple(params)


def reference_forward_bf16(x, params):
    """Pure-JAX reference with the same bf16 matmul / f32 accumulation."""
    w1, b1, w2, b2, w3, b3 = params
    h1 = jnp.dot(x.astype(jnp.bfloat16), w1.astype(jnp.bfloat16),
                 preferred_element_type=jnp.float32) + b1
    h1 = jnp.maximum(h1, 0.0)
    h2 = jnp.dot(h1.astype(jnp.bfloat16), w2.astype(jnp.bfloat16),
                 preferred_element_type=jnp.float32) + b2
    h2 = jnp.maximum(h2, 0.0)
    return jnp.dot(h2.astype(jnp.bfloat16), w3.astype(jnp.bfloat16),
                   preferred_element_type=jnp.float32) + b3


def reference_forward_f32(x, params):
    """Pure-f32 reference matching the PyTorch module exactly."""
    w1, b1, w2, b2, w3, b3 = params
    h1 = jnp.maximum(x @ w1 + b1, 0.0)
    h2 = jnp.maximum(h1 @ w2 + b2, 0.0)
    return h2 @ w3 + b3


if __name__ == "__main__":
    input_shape = 32   # state feature dimension
    num_actions = 8

    key = jax.random.PRNGKey(0)
    key, kx1, kx2 = jax.random.split(key, 3)
    params = init_params(key, input_shape, num_actions)

    # --- Tiny batch (B=8): default path uses the XLA fallback; also force the
    # Pallas kernel to verify it on an exact (8, F) tile. ---
    x_small = jax.random.normal(kx1, (8, input_shape), jnp.float32)

    out_fb = jax.block_until_ready(cnn_q_network_forward(x_small, params))
    out_kn = jax.block_until_ready(
        cnn_q_network_forward(x_small, params, min_pallas_batch=0))

    assert out_fb.shape == (8, num_actions)
    assert out_kn.shape == (8, num_actions)
    assert jnp.allclose(out_fb, reference_forward_f32(x_small, params),
                        atol=1e-5, rtol=1e-5), "fallback mismatch vs f32 reference"
    assert jnp.allclose(out_kn, reference_forward_bf16(x_small, params),
                        atol=2e-2, rtol=2e-2), "kernel mismatch vs bf16 reference"

    # --- Moderate batch (B=512): 2 grid steps of TB=256 -> exercises the
    # streamed, megacore-parallel kernel path with exactly divisible tiles. ---
    x_big = jax.random.normal(kx2, (512, input_shape), jnp.float32)
    out_big = jax.block_until_ready(cnn_q_network_forward(x_big, params))
    assert out_big.shape == (512, num_actions)
    assert jnp.allclose(out_big, reference_forward_bf16(x_big, params),
                        atol=2e-2, rtol=2e-2), "gridded kernel mismatch vs reference"

    print("KERNEL_OK")
</pallas_src>

<mosaic_0001>
module attributes {stable_mosaic.version = 11 : i64} {
  func.func @mlp_kernel(%arg0: i32, %arg1: memref<8x32xf32, #tpu.memory_space<vmem>>, %arg2: memref<32x128xbf16, #tpu.memory_space<vmem>>, %arg3: memref<1x128xf32, #tpu.memory_space<vmem>>, %arg4: memref<128x256xbf16, #tpu.memory_space<vmem>>, %arg5: memref<1x256xf32, #tpu.memory_space<vmem>>, %arg6: memref<256x128xbf16, #tpu.memory_space<vmem>>, %arg7: memref<1x128xf32, #tpu.memory_space<vmem>>, %arg8: memref<8x128xbf16, #tpu.memory_space<vmem>>) attributes {dimension_semantics = [#tpu.dimension_semantics<parallel>], iteration_bounds = array<i64: 1>, scalar_prefetch = 0 : i64, scratch_operands = 0 : i64, tpu.core_type = #tpu.core_type<tc>, window_params = [{transform_indices = @transform_0, window_bounds = array<i64: 8, 32>}, {pipeline_mode = #tpu.pipeline_mode<synchronous>, transform_indices = @transform_1, window_bounds = array<i64: 32, 128>}, {pipeline_mode = #tpu.pipeline_mode<synchronous>, transform_indices = @transform_2, window_bounds = array<i64: 1, 128>}, {pipeline_mode = #tpu.pipeline_mode<synchronous>, transform_indices = @transform_3, window_bounds = array<i64: 128, 256>}, {pipeline_mode = #tpu.pipeline_mode<synchronous>, transform_indices = @transform_4, window_bounds = array<i64: 1, 256>}, {pipeline_mode = #tpu.pipeline_mode<synchronous>, transform_indices = @transform_5, window_bounds = array<i64: 256, 128>}, {pipeline_mode = #tpu.pipeline_mode<synchronous>, transform_indices = @transform_6, window_bounds = array<i64: 1, 128>}, {transform_indices = @transform_7, window_bounds = array<i64: 8, 128>}]} {
    %c0 = arith.constant 0 : index
    %c0_0 = arith.constant 0 : index
    %0 = vector.load %arg1[%c0, %c0_0] : memref<8x32xf32, #tpu.memory_space<vmem>>, vector<8x32xf32>
    %1 = arith.truncf %0 : vector<8x32xf32> to vector<8x32xbf16>
    %c0_1 = arith.constant 0 : index
    %c0_2 = arith.constant 0 : index
    %2 = vector.load %arg2[%c0_1, %c0_2] : memref<32x128xbf16, #tpu.memory_space<vmem>>, vector<32x128xbf16>
    %cst = arith.constant dense<0.000000e+00> : vector<8x128xf32>
    %3 = tpu.matmul %1, %2, %cst {dimension_numbers = #tpu.dot_dimension_numbers<[1], [0], [0], [1], [0, 0, 1, 1], [], []>} : vector<8x32xbf16>, vector<32x128xbf16>, vector<8x128xf32> -> vector<8x128xf32>
    %c0_3 = arith.constant 0 : index
    %c0_4 = arith.constant 0 : index
    %4 = vector.load %arg3[%c0_3, %c0_4] : memref<1x128xf32, #tpu.memory_space<vmem>>, vector<1x128xf32>
    %5 = vector.broadcast %4 : vector<1x128xf32> to vector<8x128xf32>
    %6 = arith.addf %3, %5 : vector<8x128xf32>
    %cst_5 = arith.constant 0.000000e+00 : f32
    %7 = vector.broadcast %cst_5 : f32 to vector<8x128xf32>
    %8 = arith.maximumf %6, %7 : vector<8x128xf32>
    %9 = arith.truncf %8 : vector<8x128xf32> to vector<8x128xbf16>
    %c0_6 = arith.constant 0 : index
    %c0_7 = arith.constant 0 : index
    %10 = vector.load %arg4[%c0_6, %c0_7] : memref<128x256xbf16, #tpu.memory_space<vmem>>, vector<128x256xbf16>
    %cst_8 = arith.constant dense<0.000000e+00> : vector<8x256xf32>
    %11 = tpu.matmul %9, %10, %cst_8 {dimension_numbers = #tpu.dot_dimension_numbers<[1], [0], [0], [1], [0, 0, 1, 1], [], []>} : vector<8x128xbf16>, vector<128x256xbf16>, vector<8x256xf32> -> vector<8x256xf32>
    %c0_9 = arith.constant 0 : index
    %c0_10 = arith.constant 0 : index
    %12 = vector.load %arg5[%c0_9, %c0_10] : memref<1x256xf32, #tpu.memory_space<vmem>>, vector<1x256xf32>
    %13 = vector.broadcast %12 : vector<1x256xf32> to vector<8x256xf32>
    %14 = arith.addf %11, %13 : vector<8x256xf32>
    %cst_11 = arith.constant 0.000000e+00 : f32
    %15 = vector.broadcast %cst_11 : f32 to vector<8x256xf32>
    %16 = arith.maximumf %14, %15 : vector<8x256xf32>
    %17 = arith.truncf %16 : vector<8x256xf32> to vector<8x256xbf16>
    %c0_12 = arith.constant 0 : index
    %c0_13 = arith.constant 0 : index
    %18 = vector.load %arg6[%c0_12, %c0_13] : memref<256x128xbf16, #tpu.memory_space<vmem>>, vector<256x128xbf16>
    %cst_14 = arith.constant dense<0.000000e+00> : vector<8x128xf32>
    %19 = tpu.matmul %17, %18, %cst_14 {dimension_numbers = #tpu.dot_dimension_numbers<[1], [0], [0], [1], [0, 0, 1, 1], [], []>} : vector<8x256xbf16>, vector<256x128xbf16>, vector<8x128xf32> -> vector<8x128xf32>
    %c0_15 = arith.constant 0 : index
    %c0_16 = arith.constant 0 : index
    %20 = vector.load %arg7[%c0_15, %c0_16] : memref<1x128xf32, #tpu.memory_space<vmem>>, vector<1x128xf32>
    %21 = vector.broadcast %20 : vector<1x128xf32> to vector<8x128xf32>
    %22 = arith.addf %19, %21 : vector<8x128xf32>
    %23 = arith.truncf %22 : vector<8x128xf32> to vector<8x128xbf16>
    %c0_17 = arith.constant 0 : index
    %c0_18 = arith.constant 0 : index
    %24 = vector.load %arg8[%c0_17, %c0_18] : memref<8x128xbf16, #tpu.memory_space<vmem>>, vector<8x128xbf16>
    tpu.vector_store %arg8[%c0_17, %c0_18], %23 {strides = array<i32>} : memref<8x128xbf16, #tpu.memory_space<vmem>>, vector<8x128xbf16>,
    return
  }
  func.func @transform_0(%arg0: i32) -> (i32, i32) {
    %c0_i32 = arith.constant 0 : i32
    %c0_i32_0 = arith.constant 0 : i32
    return %arg0, %c0_i32 : i32, i32
  }
  func.func @transform_1(%arg0: i32) -> (i32, i32) {
    %c0_i32 = arith.constant 0 : i32
    %c0_i32_0 = arith.constant 0 : i32
    %c0_i32_1 = arith.constant 0 : i32
    return %c0_i32, %c0_i32_0 : i32, i32
  }
  func.func @transform_2(%arg0: i32) -> (i32, i32) {
    %c0_i32 = arith.constant 0 : i32
    %c0_i32_0 = arith.constant 0 : i32
    %c0_i32_1 = arith.constant 0 : i32
    return %c0_i32, %c0_i32_0 : i32, i32
  }
  func.func @transform_3(%arg0: i32) -> (i32, i32) {
    %c0_i32 = arith.constant 0 : i32
    %c0_i32_0 = arith.constant 0 : i32
    %c0_i32_1 = arith.constant 0 : i32
    return %c0_i32, %c0_i32_0 : i32, i32
  }
  func.func @transform_4(%arg0: i32) -> (i32, i32) {
    %c0_i32 = arith.constant 0 : i32
    %c0_i32_0 = arith.constant 0 : i32
    %c0_i32_1 = arith.constant 0 : i32
    return %c0_i32, %c0_i32_0 : i32, i32
  }
  func.func @transform_5(%arg0: i32) -> (i32, i32) {
    %c0_i32 = arith.constant 0 : i32
    %c0_i32_0 = arith.constant 0 : i32
    %c0_i32_1 = arith.constant 0 : i32
    return %c0_i32, %c0_i32_0 : i32, i32
  }
  func.func @transform_6(%arg0: i32) -> (i32, i32) {
    %c0_i32 = arith.constant 0 : i32
    %c0_i32_0 = arith.constant 0 : i32
    %c0_i32_1 = arith.constant 0 : i32
    return %c0_i32, %c0_i32_0 : i32, i32
  }
  func.func @transform_7(%arg0: i32) -> (i32, i32) {
    %c0_i32 = arith.constant 0 : i32
    %c0_i32_0 = arith.constant 0 : i32
    return %arg0, %c0_i32 : i32, i32
  }
}

</mosaic_0001>

<llo_original>
// kernel: tpu_custom_call.1
$region0: #{tpu_custom_call.1}
  #allocation0 [shape = 'u32[]', space=smem, size = 0x4, offset = 0x4, fixed_abs, tag = 'smem constant byte address 0x4 - core index']
  #allocation1 [shape = 'u32[144,128]{1,0:T(1,128)}', space=vmem, size = 0x12000, scoped, tag = 'internal scratch']
  %s0 = inlined_call_operand.hbm [shape: f32[8,32], index: 0, kind: input, shape index: {}]
  %s1 = inlined_call_operand.hbm [shape: bf16[32,128], index: 1, kind: input, shape index: {}]
  %s2 = inlined_call_operand.vmem [shape: f32[1,128], index: 2, kind: input, shape index: {}]
  %s3 = inlined_call_operand.hbm [shape: bf16[128,256], index: 3, kind: input, shape index: {}]
  %s4 = inlined_call_operand.vmem [shape: f32[1,256], index: 4, kind: input, shape index: {}]
  %s5 = inlined_call_operand.hbm [shape: bf16[256,128], index: 5, kind: input, shape index: {}]
  %s6 = inlined_call_operand.vmem [shape: f32[1,128], index: 6, kind: input, shape index: {}]
  %s7 = inlined_call_operand.hbm [shape: bf16[8,128], index: 7, kind: output, shape index: {}]
  %s8 = sld [smem:[#allocation0]]
  $region54: #{tpu_custom_call.1} parent=0
    _
  %s10 = ssub.s32 1, %s8
  %s11 = scalar_select 0, %s10, %s8
  $region1: #{tpu_custom_call.1} parent=0
    #allocation2 [shape = 'u8[4096]{0}', space=vmem, size = 0x1000, scoped, tag = 'input window, operand 0, single buffered']
    #allocation3 [shape = 's32[1]{0}', space=sflag, size = 0x4, scoped, tag = 'scoped memory for tpu_custom_call.1']
    #allocation4 [shape = 's32[1]{0}', space=sflag, size = 0x4, scoped, tag = 'scoped memory for tpu_custom_call.1']
    #allocation5 [shape = 'u8[8192]{0}', space=vmem, size = 0x2000, scoped, tag = 'input window, operand 1, single buffered']
    #allocation6 [shape = 's32[1]{0}', space=sflag, size = 0x4, scoped, tag = 'scoped memory for tpu_custom_call.1']
    #allocation7 [shape = 'u8[65536]{0}', space=vmem, size = 0x10000, scoped, tag = 'input window, operand 3, single buffered']
    #allocation8 [shape = 'u8[65536]{0}', space=vmem, size = 0x10000, scoped, tag = 'input window, operand 5, single buffered']
    #allocation9 [shape = 's32[1]{0}', space=sflag, size = 0x4, scoped, tag = 'scoped memory for tpu_custom_call.1']
    #allocation10 [shape = 'u8[2048]{0}', space=vmem, size = 0x800, scoped, tag = 'output window, operand 0, single buffered']
    %12 = vsyncpa [#allocation3], 0
    %13 = vsyncpa [#allocation6], 0
    %14 = vsyncpa [#allocation9], 0
    %15 = vsyncpa [#allocation4], 0
    // Predicated region
    $region2: #{tpu_custom_call.1} parent=1 // pred_check
      _
    $region3: #{tpu_custom_call.1} parent=1 // pred_check_branch
      %17 = sbr.rel (0) target = $region5
    $region4: #{tpu_custom_call.1} parent=1 // pred_region
      %s19 = ssub.s32 128, 128
      %20 = vsyncadd [#allocation3], %s19
      %s22 = sshll.u32 [#allocation2], 4
      %s23 = int_to_ptr.vmem [resolvable:$true] %s22
      %25 = dma.hbm_to_vmem [thread:$0]  %s0, 128, %s23, [#allocation3]
    $region5: #{tpu_custom_call.1} parent=1 // pred_fallthru
      _
    // Predicated region
    $region6: #{tpu_custom_call.1} parent=1 // pred_check
      _
    $region7: #{tpu_custom_call.1} parent=1 // pred_check_branch
      %27 = sbr.rel (0) target = $region9
    $region8: #{tpu_custom_call.1} parent=1 // pred_region
      %s29 = ssub.s32 256, 256
      %30 = vsyncadd [#allocation6], %s29
      %s31 = sshll.u32 [#allocation5], 4
      %s32 = int_to_ptr.vmem [resolvable:$true] %s31
      %37 = dma.hbm_to_vmem [thread:$0]  %s1, 256, %s32, [#allocation6], 64, 64, 4
    $region9: #{tpu_custom_call.1} parent=1 // pred_fallthru
      _
    // Predicated region
    $region10: #{tpu_custom_call.1} parent=1 // pred_check
      _
    $region11: #{tpu_custom_call.1} parent=1 // pred_check_branch
      %39 = sbr.rel (0) target = $region13
    $region12: #{tpu_custom_call.1} parent=1 // pred_region
      _
    $region13: #{tpu_custom_call.1} parent=1 // pred_fallthru
      _
    // Predicated region
    $region14: #{tpu_custom_call.1} parent=1 // pred_check
      _
    $region15: #{tpu_custom_call.1} parent=1 // pred_check_branch
      %41 = sbr.rel (0) target = $region17
    $region16: #{tpu_custom_call.1} parent=1 // pred_region
      %s43 = ssub.s32 2048, 2048
      %44 = vsyncadd [#allocation6], %s43
      %s45 = sshll.u32 [#allocation7], 4
      %s46 = int_to_ptr.vmem [resolvable:$true] %s45
      %51 = dma.hbm_to_vmem [thread:$0]  %s3, 2048, %s46, [#allocation6], 128, 128, 8
    $region17: #{tpu_custom_call.1} parent=1 // pred_fallthru
      _
    // Predicated region
    $region18: #{tpu_custom_call.1} parent=1 // pred_check
      _
    $region19: #{tpu_custom_call.1} parent=1 // pred_check_branch
      %53 = sbr.rel (0) target = $region21
    $region20: #{tpu_custom_call.1} parent=1 // pred_region
      _
    $region21: #{tpu_custom_call.1} parent=1 // pred_fallthru
      _
    // Predicated region
    $region22: #{tpu_custom_call.1} parent=1 // pred_check
      _
    $region23: #{tpu_custom_call.1} parent=1 // pred_check_branch
      %55 = sbr.rel (0) target = $region25
    $region24: #{tpu_custom_call.1} parent=1 // pred_region
      %s57 = ssub.s32 2048, 2048
      %58 = vsyncadd [#allocation9], %s57
      %s59 = sshll.u32 [#allocation8], 4
      %s60 = int_to_ptr.vmem [resolvable:$true] %s59
      %65 = dma.hbm_to_vmem [thread:$0]  %s5, 2048, %s60, [#allocation9], 64, 64, 4
    $region25: #{tpu_custom_call.1} parent=1 // pred_fallthru
      _
    // Predicated region
    $region26: #{tpu_custom_call.1} parent=1 // pred_check
      _
    $region27: #{tpu_custom_call.1} parent=1 // pred_check_branch
      %67 = sbr.rel (0) target = $region29
    $region28: #{tpu_custom_call.1} parent=1 // pred_region
      _
    $region29: #{tpu_custom_call.1} parent=1 // pred_fallthru
      _
    // Predicated region
    $region30: #{tpu_custom_call.1} parent=1 // pred_check
      _
    $region31: #{tpu_custom_call.1} parent=1 // pred_check_branch
      %69 = sbr.rel (0) target = $region33
    $region32: #{tpu_custom_call.1} parent=1 // pred_region
      %70 = dma.done [#allocation3], 128
    $region33: #{tpu_custom_call.1} parent=1 // pred_fallthru
      _
    // Predicated region
    $region34: #{tpu_custom_call.1} parent=1 // pred_check
      _
    $region35: #{tpu_custom_call.1} parent=1 // pred_check_branch
      %72 = sbr.rel (0) target = $region37
    $region36: #{tpu_custom_call.1} parent=1 // pred_region
      %73 = dma.done [#allocation6], 256
    $region37: #{tpu_custom_call.1} parent=1 // pred_fallthru
      _
    // Predicated region
    $region38: #{tpu_custom_call.1} parent=1 // pred_check
      _
    $region39: #{tpu_custom_call.1} parent=1 // pred_check_branch
      %75 = sbr.rel (0) target = $region41
    $region40: #{tpu_custom_call.1} parent=1 // pred_region
      %76 = dma.done [#allocation6], 2048
    $region41: #{tpu_custom_call.1} parent=1 // pred_fallthru
      _
    // Predicated region
    $region42: #{tpu_custom_call.1} parent=1 // pred_check
      _
    $region43: #{tpu_custom_call.1} parent=1 // pred_check_branch
      %78 = sbr.rel (0) target = $region45
    $region44: #{tpu_custom_call.1} parent=1 // pred_region
      %79 = dma.done [#allocation9], 2048
    $region45: #{tpu_custom_call.1} parent=1 // pred_fallthru
      _
    %v81 = vld [vmem:[#allocation2] sm:$0xff]
    %v82 = vpack.c.bf16 %v81, %v81
    %v83 = vld [vmem:[#allocation5] sm:$0xf]
    %v84 = vld [vmem:[#allocation5 + $0x4] sm:$0xf]
    %v85 = vld [vmem:[#allocation5 + $0x8] sm:$0xf]
    %v86 = vld [vmem:[#allocation5 + $0xc] sm:$0xf]
    %v87 = vld [vmem:[%s2] sm:$0x1]
    %v89 = vlaneseq
    %v90 = vshrl.u32 %v89, 7
    %v91 = vsub.s32 0, %v90
    %v92 = vrot.slane %v87, %v91
    %v98 = vunpack.c.l.b16 %v83
    %v99 = vunpack.c.l.b16 %v84
    %v100 = vunpack.c.l.b16 %v85
    %v101 = vunpack.c.l.b16 %v86
    %v102 = vpack.c.b16 %v99, %v98
    %v103 = vpack.c.b16 %v101, %v100
    %vm106 = vcmask 261120
    %v108 = vsel %vm106, %v82, 0
    %110 = vmatprep.subr.bf16.mxu0 0
    %111 = vmatpush1.bf16.msra.mxu0 %v102
    %112 = vmatprep.subr.bf16.mxu0 0
    %113 = vmatpush1.bf16.msra.mxu0 %v103
    %114 = vmatprep.subr.bf16.mxu0 0
    %115 = vmatpush1.bf16.msra.mxu0 0
    %116 = vmatprep.subr.bf16.mxu0 0
    %117 = vmatpush1.bf16.msra.mxu0 0
    %118 = vmatprep.subr.bf16.mxu0 0
    %119 = vmatpush1.bf16.msra.mxu0 0
    %120 = vmatprep.subr.bf16.mxu0 0
    %121 = vmatpush1.bf16.msra.mxu0 0
    %122 = vmatprep.subr.bf16.mxu0 0
    %123 = vmatpush1.bf16.msra.mxu0 0
    %124 = vmatprep.subr.bf16.mxu0 0
    %125 = vmatpush1.bf16.msra.mxu0 0
    %126 = vmatprep.subr.bf16.mxu0 0
    %127 = vmatpush1.bf16.msra.mxu0 0
    %128 = vmatprep.subr.bf16.mxu0 0
    %129 = vmatpush1.bf16.msra.mxu0 0
    %130 = vmatprep.subr.bf16.mxu0 0
    %131 = vmatpush1.bf16.msra.mxu0 0
    %132 = vmatprep.subr.bf16.mxu0 0
    %133 = vmatpush1.bf16.msra.mxu0 0
    %134 = vmatprep.subr.bf16.mxu0 0
    %135 = vmatpush1.bf16.msra.mxu0 0
    %136 = vmatprep.subr.bf16.mxu0 0
    %137 = vmatpush1.bf16.msra.mxu0 0
    %138 = vmatprep.subr.bf16.mxu0 0
    %139 = vmatpush1.bf16.msra.mxu0 0
    %140 = vmatprep.subr.bf16.mxu0 0
    %141 = vmatpush1.bf16.msra.mxu0 0
    %142 = vmatprep.mubr.bf16.mxu0 0
    %143 = vmatmul.mubr.bf16.gmra.mrb[0].mxu0 %v108
    %v144 = vpop.f32.mrb[0].mxu0
    %v145 = vadd.f32 %v92, %v144
    %v146 = vpop.f32.mrb[0].mxu0
    %v147 = vpop.f32.mrb[0].mxu0
    %v148 = vpop.f32.mrb[0].mxu0
    %149 = vdwg.mxu0
    %v150 = vmax.f32 %v145, 0.0
    %v151 = vpack.c.bf16 %v150, %v150
    %v152 = vld [vmem:[#allocation7] sm:$0xff]
    %v153 = vld [vmem:[#allocation7 + $0x8] sm:$0xff]
    %v154 = vld [vmem:[#allocation7 + $0x10] sm:$0xff]
    %v155 = vld [vmem:[#allocation7 + $0x18] sm:$0xff]
    %v156 = vld [vmem:[#allocation7 + $0x20] sm:$0xff]
    %v157 = vld [vmem:[#allocation7 + $0x28] sm:$0xff]
    %v158 = vld [vmem:[#allocation7 + $0x30] sm:$0xff]
    %v159 = vld [vmem:[#allocation7 + $0x38] sm:$0xff]
    %v160 = vld [vmem:[#allocation7 + $0x40] sm:$0xff]
    %v161 = vld [vmem:[#allocation7 + $0x48] sm:$0xff]
    %v162 = vld [vmem:[#allocation7 + $0x50] sm:$0xff]
    %v163 = vld [vmem:[#allocation7 + $0x58] sm:$0xff]
    %v164 = vld [vmem:[#allocation7 + $0x60] sm:$0xff]
    %v165 = vld [vmem:[#allocation7 + $0x68] sm:$0xff]
    %v166 = vld [vmem:[#allocation7 + $0x70] sm:$0xff]
    %v167 = vld [vmem:[#allocation7 + $0x78] sm:$0xff]
    %v168 = vld [vmem:[%s4] sm:$0x3]
    %v170 = vlaneseq
    %v171 = vshrl.u32 %v170, 7
    %v172 = vsub.s32 0, %v171
    %v173 = vrot.slane %v168, %v172
    %v174 = vlaneseq
    %v175 = vshrl.u32 %v174, 7
    %v176 = vsub.s32 1, %v175
    %v177 = vrot.slane %v168, %v176
    %v196 = vunpack.c.l.b16 %v152
    %v197 = vunpack.c.h.b16 %v152
    %v198 = vunpack.c.l.b16 %v153
    %v199 = vunpack.c.h.b16 %v153
    %v200 = vunpack.c.l.b16 %v154
    %v201 = vunpack.c.h.b16 %v154
    %v202 = vunpack.c.l.b16 %v155
    %v203 = vunpack.c.h.b16 %v155
    %v204 = vunpack.c.l.b16 %v156
    %v205 = vunpack.c.h.b16 %v156
    %v206 = vunpack.c.l.b16 %v157
    %v207 = vunpack.c.h.b16 %v157
    %v208 = vunpack.c.l.b16 %v158
    %v209 = vunpack.c.h.b16 %v158
    %v210 = vunpack.c.l.b16 %v159
    %v211 = vunpack.c.h.b16 %v159
    %v212 = vunpack.c.l.b16 %v160
    %v213 = vunpack.c.h.b16 %v160
    %v214 = vunpack.c.l.b16 %v161
    %v215 = vunpack.c.h.b16 %v161
    %v216 = vunpack.c.l.b16 %v162
    %v217 = vunpack.c.h.b16 %v162
    %v218 = vunpack.c.l.b16 %v163
    %v219 = vunpack.c.h.b16 %v163
    %v220 = vunpack.c.l.b16 %v164
    %v221 = vunpack.c.h.b16 %v164
    %v222 = vunpack.c.l.b16 %v165
    %v223 = vunpack.c.h.b16 %v165
    %v224 = vunpack.c.l.b16 %v166
    %v225 = vunpack.c.h.b16 %v166
    %v226 = vunpack.c.l.b16 %v167
    %v227 = vunpack.c.h.b16 %v167
    %v228 = vpack.c.b16 %v198, %v196
    %v229 = vpack.c.b16 %v199, %v197
    %v230 = vpack.c.b16 %v202, %v200
    %v231 = vpack.c.b16 %v203, %v201
    %v232 = vpack.c.b16 %v206, %v204
    %v233 = vpack.c.b16 %v207, %v205
    %v234 = vpack.c.b16 %v210, %v208
    %v235 = vpack.c.b16 %v211, %v209
    %v236 = vpack.c.b16 %v214, %v212
    %v237 = vpack.c.b16 %v215, %v213
    %v238 = vpack.c.b16 %v218, %v216
    %v239 = vpack.c.b16 %v219, %v217
    %v240 = vpack.c.b16 %v222, %v220
    %v241 = vpack.c.b16 %v223, %v221
    %v242 = vpack.c.b16 %v226, %v224
    %v243 = vpack.c.b16 %v227, %v225
    %260 = vmatprep.subr.bf16.mxu0 %v229
    %261 = vmatpush1.bf16.msra.mxu0 %v228
    %262 = vmatprep.subr.bf16.mxu0 %v231
    %263 = vmatpush1.bf16.msra.mxu0 %v230
    %264 = vmatprep.subr.bf16.mxu0 %v233
    %265 = vmatpush1.bf16.msra.mxu0 %v232
    %266 = vmatprep.subr.bf16.mxu0 %v235
    %267 = vmatpush1.bf16.msra.mxu0 %v234
    %268 = vmatprep.subr.bf16.mxu0 %v237
    %269 = vmatpush1.bf16.msra.mxu0 %v236
    %270 = vmatprep.subr.bf16.mxu0 %v239
    %271 = vmatpush1.bf16.msra.mxu0 %v238
    %272 = vmatprep.subr.bf16.mxu0 %v241
    %273 = vmatpush1.bf16.msra.mxu0 %v240
    %274 = vmatprep.subr.bf16.mxu0 %v243
    %275 = vmatpush1.bf16.msra.mxu0 %v242
    %276 = vmatprep.subr.bf16.mxu0 0
    %277 = vmatpush1.bf16.msra.mxu0 0
    %278 = vmatprep.subr.bf16.mxu0 0
    %279 = vmatpush1.bf16.msra.mxu0 0
    %280 = vmatprep.subr.bf16.mxu0 0
    %281 = vmatpush1.bf16.msra.mxu0 0
    %282 = vmatprep.subr.bf16.mxu0 0
    %283 = vmatpush1.bf16.msra.mxu0 0
    %284 = vmatprep.subr.bf16.mxu0 0
    %285 = vmatpush1.bf16.msra.mxu0 0
    %286 = vmatprep.subr.bf16.mxu0 0
    %287 = vmatpush1.bf16.msra.mxu0 0
    %288 = vmatprep.subr.bf16.mxu0 0
    %289 = vmatpush1.bf16.msra.mxu0 0
    %290 = vmatprep.subr.bf16.mxu0 0
    %291 = vmatpush1.bf16.msra.mxu0 0
    %292 = vmatprep.mubr.bf16.mxu0 0
    %293 = vmatmul.mubr.bf16.gmra.mrb[0].mxu0 %v151
    %v294 = vpop.f32.mrb[0].mxu0
    %v295 = vadd.f32 %v173, %v294
    %v296 = vpop.f32.mrb[0].mxu0
    %v297 = vadd.f32 %v177, %v296
    %v298 = vpop.f32.mrb[0].mxu0
    %v299 = vpop.f32.mrb[0].mxu0
    %300 = vdwg.mxu0
    %v301 = vmax.f32 %v295, 0.0
    %v302 = vmax.f32 %v297, 0.0
    %v303 = vpack.c.bf16 %v301, %v301
    %v304 = vpack.c.bf16 %v302, %v302
    %v305 = vld [vmem:[#allocation8] sm:$0xf]
    %v306 = vld [vmem:[#allocation8 + $0x4] sm:$0xf]
    %v307 = vld [vmem:[#allocation8 + $0x8] sm:$0xf]
    %v308 = vld [vmem:[#allocation8 + $0xc] sm:$0xf]
    %v309 = vld [vmem:[#allocation8 + $0x10] sm:$0xf]
    %v310 = vld [vmem:[#allocation8 + $0x14] sm:$0xf]
    %v311 = vld [vmem:[#allocation8 + $0x18] sm:$0xf]
    %v312 = vld [vmem:[#allocation8 + $0x1c] sm:$0xf]
    %v313 = vld [vmem:[#allocation8 + $0x20] sm:$0xf]
    %v314 = vld [vmem:[#allocation8 + $0x24] sm:$0xf]
    %v315 = vld [vmem:[#allocation8 + $0x28] sm:$0xf]
    %v316 = vld [vmem:[#allocation8 + $0x2c] sm:$0xf]
    %v317 = vld [vmem:[#allocation8 + $0x30] sm:$0xf]
    %v318 = vld [vmem:[#allocation8 + $0x34] sm:$0xf]
    %v319 = vld [vmem:[#allocation8 + $0x38] sm:$0xf]
    %v320 = vld [vmem:[#allocation8 + $0x3c] sm:$0xf]
    %v321 = vld [vmem:[#allocation8 + $0x40] sm:$0xf]
    %v322 = vld [vmem:[#allocation8 + $0x44] sm:$0xf]
    %v323 = vld [vmem:[#allocation8 + $0x48] sm:$0xf]
    %v324 = vld [vmem:[#allocation8 + $0x4c] sm:$0xf]
    %v325 = vld [vmem:[#allocation8 + $0x50] sm:$0xf]
    %v326 = vld [vmem:[#allocation8 + $0x54] sm:$0xf]
    %v327 = vld [vmem:[#allocation8 + $0x58] sm:$0xf]
    %v328 = vld [vmem:[#allocation8 + $0x5c] sm:$0xf]
    %v329 = vld [vmem:[#allocation8 + $0x60] sm:$0xf]
    %v330 = vld [vmem:[#allocation8 + $0x64] sm:$0xf]
    %v331 = vld [vmem:[#allocation8 + $0x68] sm:$0xf]
    %v332 = vld [vmem:[#allocation8 + $0x6c] sm:$0xf]
    %v333 = vld [vmem:[#allocation8 + $0x70] sm:$0xf]
    %v334 = vld [vmem:[#allocation8 + $0x74] sm:$0xf]
    %v335 = vld [vmem:[#allocation8 + $0x78] sm:$0xf]
    %v336 = vld [vmem:[#allocation8 + $0x7c] sm:$0xf]
    %v337 = vld [vmem:[%s6] sm:$0x1]
    %v339 = vlaneseq
    %v340 = vshrl.u32 %v339, 7
    %v341 = vsub.s32 0, %v340
    %v342 = vrot.slane %v337, %v341
    %v376 = vunpack.c.l.b16 %v305
    %v377 = vunpack.c.l.b16 %v306
    %v378 = vunpack.c.l.b16 %v307
    %v379 = vunpack.c.l.b16 %v308
    %v380 = vunpack.c.l.b16 %v309
    %v381 = vunpack.c.l.b16 %v310
    %v382 = vunpack.c.l.b16 %v311
    %v383 = vunpack.c.l.b16 %v312
    %v384 = vunpack.c.l.b16 %v313
    %v385 = vunpack.c.l.b16 %v314
    %v386 = vunpack.c.l.b16 %v315
    %v387 = vunpack.c.l.b16 %v316
    %v388 = vunpack.c.l.b16 %v317
    %v389 = vunpack.c.l.b16 %v318
    %v390 = vunpack.c.l.b16 %v319
    %v391 = vunpack.c.l.b16 %v320
    %v392 = vunpack.c.l.b16 %v321
    %v393 = vunpack.c.l.b16 %v322
    %v394 = vunpack.c.l.b16 %v323
    %v395 = vunpack.c.l.b16 %v324
    %v396 = vunpack.c.l.b16 %v325
    %v397 = vunpack.c.l.b16 %v326
    %v398 = vunpack.c.l.b16 %v327
    %v399 = vunpack.c.l.b16 %v328
    %v400 = vunpack.c.l.b16 %v329
    %v401 = vunpack.c.l.b16 %v330
    %v402 = vunpack.c.l.b16 %v331
    %v403 = vunpack.c.l.b16 %v332
    %v404 = vunpack.c.l.b16 %v333
    %v405 = vunpack.c.l.b16 %v334
    %v406 = vunpack.c.l.b16 %v335
    %v407 = vunpack.c.l.b16 %v336
    %v408 = vpack.c.b16 %v377, %v376
    %v409 = vpack.c.b16 %v379, %v378
    %v410 = vpack.c.b16 %v381, %v380
    %v411 = vpack.c.b16 %v383, %v382
    %v412 = vpack.c.b16 %v385, %v384
    %v413 = vpack.c.b16 %v387, %v386
    %v414 = vpack.c.b16 %v389, %v388
    %v415 = vpack.c.b16 %v391, %v390
    %v416 = vpack.c.b16 %v393, %v392
    %v417 = vpack.c.b16 %v395, %v394
    %v418 = vpack.c.b16 %v397, %v396
    %v419 = vpack.c.b16 %v399, %v398
    %v420 = vpack.c.b16 %v401, %v400
    %v421 = vpack.c.b16 %v403, %v402
    %v422 = vpack.c.b16 %v405, %v404
    %v423 = vpack.c.b16 %v407, %v406
    %440 = vmatprep.subr.bf16.mxu0 0
    %441 = vmatpush1.bf16.msra.mxu0 %v408
    %442 = vmatprep.subr.bf16.mxu0 0
    %443 = vmatpush1.bf16.msra.mxu0 %v409
    %444 = vmatprep.subr.bf16.mxu0 0
    %445 = vmatpush1.bf16.msra.mxu0 %v410
    %446 = vmatprep.subr.bf16.mxu0 0
    %447 = vmatpush1.bf16.msra.mxu0 %v411
    %448 = vmatprep.subr.bf16.mxu0 0
    %449 = vmatpush1.bf16.msra.mxu0 %v412
    %450 = vmatprep.subr.bf16.mxu0 0
    %451 = vmatpush1.bf16.msra.mxu0 %v413
    %452 = vmatprep.subr.bf16.mxu0 0
    %453 = vmatpush1.bf16.msra.mxu0 %v414
    %454 = vmatprep.subr.bf16.mxu0 0
    %455 = vmatpush1.bf16.msra.mxu0 %v415
    %456 = vmatprep.subr.bf16.mxu0 0
    %457 = vmatpush1.bf16.msra.mxu0 %v416
    %458 = vmatprep.subr.bf16.mxu0 0
    %459 = vmatpush1.bf16.msra.mxu0 %v417
    %460 = vmatprep.subr.bf16.mxu0 0
    %461 = vmatpush1.bf16.msra.mxu0 %v418
    %462 = vmatprep.subr.bf16.mxu0 0
    %463 = vmatpush1.bf16.msra.mxu0 %v419
    %464 = vmatprep.subr.bf16.mxu0 0
    %465 = vmatpush1.bf16.msra.mxu0 %v420
    %466 = vmatprep.subr.bf16.mxu0 0
    %467 = vmatpush1.bf16.msra.mxu0 %v421
    %468 = vmatprep.subr.bf16.mxu0 0
    %469 = vmatpush1.bf16.msra.mxu0 %v422
    %470 = vmatprep.subr.bf16.mxu0 0
    %471 = vmatpush1.bf16.msra.mxu0 %v423
    %472 = vmatprep.mubr.bf16.mxu0 %v304
    %473 = vmatmul.mubr.bf16.gmra.mrb[0].mxu0 %v303
    %v474 = vpop.f32.mrb[0].mxu0
    %v475 = vadd.f32 %v342, %v474
    %v476 = vpop.f32.mrb[0].mxu0
    %v477 = vpop.f32.mrb[0].mxu0
    %v478 = vpop.f32.mrb[0].mxu0
    %479 = vdwg.mxu0
    %v480 = vpack.c.bf16 %v475, %v475
    %481 = vst [vmem:[#allocation10] sm:$0xf] %v480
    // Predicated region
    $region46: #{tpu_custom_call.1} parent=1 // pred_check
      _
    $region47: #{tpu_custom_call.1} parent=1 // pred_check_branch
      %483 = sbr.rel (0) target = $region49
    $region48: #{tpu_custom_call.1} parent=1 // pred_region
      %s485 = ssub.s32 64, 64
      %486 = vsyncadd [#allocation4], %s485
      %s488 = sshll.u32 [#allocation10], 4
      %s489 = int_to_ptr.vmem [resolvable:$true] %s488
      %491 = dma.vmem_to_hbm [thread:$0]  %s489, 64, %s7, [#allocation4]
    $region49: #{tpu_custom_call.1} parent=1 // pred_fallthru
      _
    // Predicated region
    $region50: #{tpu_custom_call.1} parent=1 // pred_check
      _
    $region51: #{tpu_custom_call.1} parent=1 // pred_check_branch
      %493 = sbr.rel (0) target = $region53
    $region52: #{tpu_custom_call.1} parent=1 // pred_region
      %494 = dma.done [#allocation4], 64
    $region53: #{tpu_custom_call.1} parent=1 // pred_fallthru
      _
    %495 = vsyncpa [#allocation3], 1
    %496 = vsyncpa [#allocation6], 1
    %497 = vsyncpa [#allocation9], 1
    %498 = vsyncpa [#allocation4], 1

</llo_original>
